<compile_context>
chip_gen: v5e
topology: v5e:2x2
jax: 0.10.0
libtpu: 0.0.40
codegen_flags: <defaults>
</compile_context>

<pallas_src>
import functools
import numpy as np

import jax
import jax.numpy as jnp
from jax.experimental import pallas as pl
from jax.experimental.pallas import tpu as pltpu


# ---------------------------------------------------------------------------
# Pass 1: transposed conv as ONE stacked-tap matmul per tile
#         + per-channel sum / sum-of-squares over valid lanes.
# Grid: (2 core-slices [parallel], tiles-per-slice [arbitrary, stats resident]).
# ---------------------------------------------------------------------------
def _tconv_stats_kernel(xa_ref, xb_ref, w_ref, m_ref, y_ref, s1_ref, s2_ref,
                        *, shifts, tm):
    i = pl.program_id(1)

    # Aligned tile + right-neighbour halo; every tap is a static flat shift.
    x2 = jnp.concatenate([xa_ref[...], xb_ref[...]], axis=1)          # (Cin, 2*TM)
    # Stack all kH*kW shifted windows along the contraction axis.
    xk = jnp.concatenate([x2[:, s:s + tm] for s in shifts], axis=0)   # (kk*Cin, TM)

    # Single MXU matmul for the whole tile, f32 accumulation.
    acc = jnp.dot(w_ref[...], xk, preferred_element_type=jnp.float32)  # (Cout, TM)

    y_ref[...] = acc.astype(y_ref.dtype)                               # bf16 interm.

    @pl.when(i == 0)
    def _():
        s1_ref[...] = jnp.zeros_like(s1_ref)
        s2_ref[...] = jnp.zeros_like(s2_ref)

    # Mask padded / invalid lanes out of the BN statistics.
    ym = acc * m_ref[...]
    s1_ref[...] += jnp.sum(ym, axis=1, keepdims=True)
    s2_ref[...] += jnp.sum(ym * ym, axis=1, keepdims=True)


# ---------------------------------------------------------------------------
# Pass 2: y * scale + offset, then ReLU / Sigmoid.  scale/offset already fold
# the batch statistics + affine parameters.
# ---------------------------------------------------------------------------
def _bn_act_kernel(y_ref, sc_ref, off_ref, o_ref, *, is_last):
    v = y_ref[...].astype(jnp.float32) * sc_ref[...] + off_ref[...]
    if is_last:
        o_ref[...] = jax.nn.sigmoid(v)
    else:
        o_ref[...] = jnp.maximum(v, 0.0)


# ---------------------------------------------------------------------------
# Wrapper: NCHW <-> channel-major flattened plumbing + the two pallas_calls.
# ---------------------------------------------------------------------------
@functools.partial(jax.jit, static_argnames=("stride", "padding",
                                             "output_padding", "is_last",
                                             "eps", "tm"))
def decoder_forward(x, weight, bias, gamma, beta, *, stride, padding=(0, 0),
                    output_padding=(0, 0), is_last=False, eps=1e-5, tm=512):
    del bias  # cancels exactly under training-mode BatchNorm (see header note)

    N, Cin, H, W = x.shape
    _, Cout, kH, kW = weight.shape
    sh, sw = stride
    ph, pw = padding
    oph, opw = output_padding
    Hout = (H - 1) * sh - 2 * ph + kH + oph
    Wout = (W - 1) * sw - 2 * pw + kW + opw
    assert kH - 1 - ph >= 0 and kW - 1 - pw >= 0   # standard ConvTranspose configs

    # Zero-dilated + padded input (stride-1 conv equivalent of the transposed conv).
    Hd, Wd = (H - 1) * sh + 1, (W - 1) * sw + 1
    x_dil = jnp.zeros((N, Cin, Hd, Wd), jnp.float32)
    x_dil = x_dil.at[:, :, ::sh, ::sw].set(x.astype(jnp.float32))
    x_pad = jnp.pad(x_dil, ((0, 0), (0, 0),
                            (kH - 1 - ph, kH - 1 - ph + oph),
                            (kW - 1 - pw, kW - 1 - pw + opw)))
    Hp, Wp = x_pad.shape[2], x_pad.shape[3]
    assert Hout == Hp - kH + 1 and Wout == Wp - kW + 1

    # Channel-major, spatially flattened view: tap (a,b) == flat shift a*Wp + b.
    L = N * Hp * Wp
    max_shift = (kH - 1) * Wp + (kW - 1)
    TM = ((max(tm, max_shift) + 127) // 128) * 128   # halo tile must cover all shifts
    half = pl.cdiv(L, 2 * TM)                        # tiles per core-slice (2 slices)
    ntiles = 2 * half
    Lp = ntiles * TM
    Ltot = Lp + TM                                   # one extra zero tile for the halo ref

    xc = x_pad.transpose(1, 0, 2, 3).reshape(Cin, L)
    xc = jnp.pad(xc, ((0, 0), (0, Ltot - L))).astype(jnp.bfloat16)

    # Stacked-tap weights: w_mat[d, (a*kW+b)*Cin + c] = weight[c, d, kH-1-a, kW-1-b].
    kk = kH * kW
    w_mat = jnp.flip(weight, (2, 3)).transpose(1, 2, 3, 0)      # (Cout, kH, kW, Cin)
    w_mat = w_mat.reshape(Cout, kk * Cin).astype(jnp.bfloat16)

    # Validity mask over the flat output space (only h<Hout and w<Wout are real).
    valid = (jnp.arange(Hp)[:, None] < Hout) & (jnp.arange(Wp)[None, :] < Wout)
    mask = jnp.broadcast_to(valid[None], (N, Hp, Wp)).reshape(1, L).astype(jnp.float32)
    mask = jnp.pad(mask, ((0, 0), (0, Lp - L)))

    shifts = tuple(a * Wp + b for a in range(kH) for b in range(kW))

    # ---- pass 1: transposed conv (one stacked matmul/tile) + per-channel stats
    y, s_sum, s_sq = pl.pallas_call(
        functools.partial(_tconv_stats_kernel, shifts=shifts, tm=TM),
        out_shape=(jax.ShapeDtypeStruct((Cout, Lp), jnp.bfloat16),
                   jax.ShapeDtypeStruct((2, Cout, 1), jnp.float32),
                   jax.ShapeDtypeStruct((2, Cout, 1), jnp.float32)),
        grid=(2, half),
        in_specs=[
            pl.BlockSpec((Cin, TM), lambda c, i: (0, c * half + i)),       # tile
            pl.BlockSpec((Cin, TM), lambda c, i: (0, c * half + i + 1)),   # halo
            pl.BlockSpec((Cout, kk * Cin), lambda c, i: (0, 0)),           # weights
            pl.BlockSpec((1, TM), lambda c, i: (0, c * half + i)),         # mask
        ],
        out_specs=(pl.BlockSpec((Cout, TM), lambda c, i: (0, c * half + i)),
                   pl.BlockSpec((None, Cout, 1), lambda c, i: (c, 0, 0)),
                   pl.BlockSpec((None, Cout, 1), lambda c, i: (c, 0, 0))),
        compiler_params=pltpu.CompilerParams(
            dimension_semantics=("parallel", "arbitrary")),
    )(xc, xc, w_mat, mask)

    # ---- glue: fold batch stats into per-channel scale / offset (training BN)
    m_valid = float(N * Hout * Wout)
    ssum = s_sum.sum(axis=0)                          # (Cout, 1)
    ssq = s_sq.sum(axis=0)                            # (Cout, 1)
    mean = ssum / m_valid
    var = jnp.maximum(ssq / m_valid - mean * mean, 0.0)   # biased (PyTorch train)
    inv = jax.lax.rsqrt(var + eps)
    g = gamma.astype(jnp.float32).reshape(Cout, 1)
    bt = beta.astype(jnp.float32).reshape(Cout, 1)
    scale = g * inv                                   # (Cout, 1)
    offset = bt - mean * scale                        # (Cout, 1)

    # ---- pass 2: normalize (single FMA) + activation -------------------------
    out_flat = pl.pallas_call(
        functools.partial(_bn_act_kernel, is_last=is_last),
        out_shape=jax.ShapeDtypeStruct((Cout, Lp), jnp.float32),
        grid=(ntiles,),
        in_specs=[pl.BlockSpec((Cout, TM), lambda i: (0, i)),
                  pl.BlockSpec((Cout, 1), lambda i: (0, 0)),
                  pl.BlockSpec((Cout, 1), lambda i: (0, 0))],
        out_specs=pl.BlockSpec((Cout, TM), lambda i: (0, i)),
        compiler_params=pltpu.CompilerParams(dimension_semantics=("parallel",)),
    )(y, scale, offset)

    # Back to NCHW: keep only the valid (Hout, Wout) window of each image.
    out = out_flat[:, :L].reshape(Cout, N, Hp, Wp)[:, :, :Hout, :Wout]
    return out.transpose(1, 0, 2, 3)


# ---------------------------------------------------------------------------
# Pure NumPy reference implementing the PyTorch semantics directly (scatter
# form of ConvTranspose2d; padding = output_padding = (0,0) as used in main).
# ---------------------------------------------------------------------------
def numpy_reference(x, weight, bias, gamma, beta, stride, eps, is_last):
    x = np.asarray(x, np.float64)
    w = np.asarray(weight, np.float64)
    N, Cin, H, W = x.shape
    _, Cout, kH, kW = w.shape
    sh, sw = stride
    Hout = (H - 1) * sh + kH
    Wout = (W - 1) * sw + kW
    y = np.zeros((N, Cout, Hout, Wout), np.float64)
    for a in range(kH):
        for b in range(kW):
            contrib = np.einsum('nchw,cd->ndhw', x, w[:, :, a, b])
            y[:, :, a:a + (H - 1) * sh + 1:sh,
                  b:b + (W - 1) * sw + 1:sw] += contrib
    y += np.asarray(bias, np.float64)[None, :, None, None]
    mean = y.mean(axis=(0, 2, 3), keepdims=True)
    var = y.var(axis=(0, 2, 3), keepdims=True)        # biased, like PyTorch train
    yn = (y - mean) / np.sqrt(var + eps)
    yn = yn * np.asarray(gamma, np.float64)[None, :, None, None] \
            + np.asarray(beta, np.float64)[None, :, None, None]
    return 1.0 / (1.0 + np.exp(-yn)) if is_last else np.maximum(yn, 0.0)


if __name__ == "__main__":
    # Small, module-consistent shapes (decoder block of DCUNet).
    N, Cin, Cout, H, W = 2, 8, 4, 8, 8
    kH, kW = 3, 3
    stride = (2, 2)

    key = jax.random.PRNGKey(0)
    k1, k2, k3, k4, k5 = jax.random.split(key, 5)
    x = jax.random.normal(k1, (N, Cin, H, W), jnp.float32)
    weight = jax.random.normal(k2, (Cin, Cout, kH, kW), jnp.float32) / np.sqrt(Cin * kH * kW)
    bias = 0.1 * jax.random.normal(k3, (Cout,), jnp.float32)
    gamma = 1.0 + 0.1 * jax.random.normal(k4, (Cout,), jnp.float32)
    beta = 0.1 * jax.random.normal(k5, (Cout,), jnp.float32)

    for is_last in (False, True):     # ReLU decoder block and the final Sigmoid block
        out = decoder_forward(x, weight, bias, gamma, beta, stride=stride,
                              is_last=is_last)
        out = jax.block_until_ready(out)
        ref = numpy_reference(x, weight, bias, gamma, beta, stride, 1e-5, is_last)
        assert out.shape == ref.shape == (N, Cout, (H - 1) * 2 + kH, (W - 1) * 2 + kW)
        # bf16 MXU inputs + bf16 intermediate -> a few e-3 typical error, 4e-2 budget.
        np.testing.assert_allclose(np.asarray(out, np.float64), ref,
                                   atol=4e-2, rtol=4e-2)

    print("KERNEL_OK")
</pallas_src>

<mosaic_0001>
module attributes {stable_mosaic.version = 11 : i64} {
  func.func @_bn_act_kernel(%arg0: i32, %arg1: memref<4x512xbf16, #tpu.memory_space<vmem>>, %arg2: memref<4x1xf32, #tpu.memory_space<vmem>>, %arg3: memref<4x1xf32, #tpu.memory_space<vmem>>, %arg4: memref<4x512xf32, #tpu.memory_space<vmem>>) attributes {dimension_semantics = [#tpu.dimension_semantics<parallel>], iteration_bounds = array<i64: 2>, scalar_prefetch = 0 : i64, scratch_operands = 0 : i64, tpu.core_type = #tpu.core_type<tc>, window_params = [{transform_indices = @transform_0, window_bounds = array<i64: 4, 512>}, {pipeline_mode = #tpu.pipeline_mode<synchronous>, transform_indices = @transform_1, window_bounds = array<i64: 4, 1>}, {pipeline_mode = #tpu.pipeline_mode<synchronous>, transform_indices = @transform_2, window_bounds = array<i64: 4, 1>}, {transform_indices = @transform_3, window_bounds = array<i64: 4, 512>}]} {
    %c0 = arith.constant 0 : index
    %c0_0 = arith.constant 0 : index
    %0 = vector.load %arg1[%c0, %c0_0] : memref<4x512xbf16, #tpu.memory_space<vmem>>, vector<4x512xbf16>
    %1 = arith.extf %0 : vector<4x512xbf16> to vector<4x512xf32>
    %c0_1 = arith.constant 0 : index
    %c0_2 = arith.constant 0 : index
    %2 = vector.load %arg2[%c0_1, %c0_2] : memref<4x1xf32, #tpu.memory_space<vmem>>, vector<4x1xf32>
    %3 = vector.broadcast %2 : vector<4x1xf32> to vector<4x512xf32>
    %4 = arith.mulf %1, %3 : vector<4x512xf32>
    %c0_3 = arith.constant 0 : index
    %c0_4 = arith.constant 0 : index
    %5 = vector.load %arg3[%c0_3, %c0_4] : memref<4x1xf32, #tpu.memory_space<vmem>>, vector<4x1xf32>
    %6 = vector.broadcast %5 : vector<4x1xf32> to vector<4x512xf32>
    %7 = arith.addf %4, %6 : vector<4x512xf32>
    %cst = arith.constant 0.000000e+00 : f32
    %8 = vector.broadcast %cst : f32 to vector<4x512xf32>
    %9 = arith.maximumf %7, %8 : vector<4x512xf32>
    %c0_5 = arith.constant 0 : index
    %c0_6 = arith.constant 0 : index
    %10 = vector.load %arg4[%c0_5, %c0_6] : memref<4x512xf32, #tpu.memory_space<vmem>>, vector<4x512xf32>
    tpu.vector_store %arg4[%c0_5, %c0_6], %9 {strides = array<i32>} : memref<4x512xf32, #tpu.memory_space<vmem>>, vector<4x512xf32>,
    return
  }
  func.func @transform_0(%arg0: i32) -> (i32, i32) {
    %c0_i32 = arith.constant 0 : i32
    %c0_i32_0 = arith.constant 0 : i32
    return %c0_i32, %arg0 : i32, i32
  }
  func.func @transform_1(%arg0: i32) -> (i32, i32) {
    %c0_i32 = arith.constant 0 : i32
    %c0_i32_0 = arith.constant 0 : i32
    %c0_i32_1 = arith.constant 0 : i32
    return %c0_i32, %c0_i32_0 : i32, i32
  }
  func.func @transform_2(%arg0: i32) -> (i32, i32) {
    %c0_i32 = arith.constant 0 : i32
    %c0_i32_0 = arith.constant 0 : i32
    %c0_i32_1 = arith.constant 0 : i32
    return %c0_i32, %c0_i32_0 : i32, i32
  }
  func.func @transform_3(%arg0: i32) -> (i32, i32) {
    %c0_i32 = arith.constant 0 : i32
    %c0_i32_0 = arith.constant 0 : i32
    return %c0_i32, %arg0 : i32, i32
  }
}

module attributes {stable_mosaic.version = 11 : i64} {
  func.func @_tconv_stats_kernel(%arg0: i32, %arg1: i32, %arg2: memref<8x512xbf16, #tpu.memory_space<vmem>>, %arg3: memref<8x512xbf16, #tpu.memory_space<vmem>>, %arg4: memref<4x72xbf16, #tpu.memory_space<vmem>>, %arg5: memref<1x512xf32, #tpu.memory_space<vmem>>, %arg6: memref<4x512xbf16, #tpu.memory_space<vmem>>, %arg7: memref<1x4x1xf32, #tpu.memory_space<vmem>>, %arg8: memref<1x4x1xf32, #tpu.memory_space<vmem>>) attributes {dimension_semantics = [#tpu.dimension_semantics<parallel>, #tpu.dimension_semantics<arbitrary>], iteration_bounds = array<i64: 2, 1>, scalar_prefetch = 0 : i64, scratch_operands = 0 : i64, tpu.core_type = #tpu.core_type<tc>, window_params = [{transform_indices = @transform_0, window_bounds = array<i64: 8, 512>}, {transform_indices = @transform_1, window_bounds = array<i64: 8, 512>}, {pipeline_mode = #tpu.pipeline_mode<synchronous>, transform_indices = @transform_2, window_bounds = array<i64: 4, 72>}, {transform_indices = @transform_3, window_bounds = array<i64: 1, 512>}, {transform_indices = @transform_4, window_bounds = array<i64: 4, 512>}, {transform_indices = @transform_5, window_bounds = array<i64: 1, 4, 1>}, {transform_indices = @transform_6, window_bounds = array<i64: 1, 4, 1>}]} {
    %c0 = arith.constant 0 : index
    %c0_0 = arith.constant 0 : index
    %0 = vector.load %arg2[%c0, %c0_0] : memref<8x512xbf16, #tpu.memory_space<vmem>>, vector<8x512xbf16>
    %c0_1 = arith.constant 0 : index
    %c0_2 = arith.constant 0 : index
    %1 = vector.load %arg3[%c0_1, %c0_2] : memref<8x512xbf16, #tpu.memory_space<vmem>>, vector<8x512xbf16>
    %2 = tpu.concatenate %0, %1 in 1 : vector<8x512xbf16>, vector<8x512xbf16> -> vector<8x1024xbf16>
    %3 = vector.extract_strided_slice %2 {offsets = [0, 0], sizes = [8, 512], strides = [1, 1]} : vector<8x1024xbf16> to vector<8x512xbf16>
    %4 = vector.extract_strided_slice %2 {offsets = [0, 1], sizes = [8, 512], strides = [1, 1]} : vector<8x1024xbf16> to vector<8x512xbf16>
    %5 = vector.extract_strided_slice %2 {offsets = [0, 2], sizes = [8, 512], strides = [1, 1]} : vector<8x1024xbf16> to vector<8x512xbf16>
    %6 = vector.extract_strided_slice %2 {offsets = [0, 19], sizes = [8, 512], strides = [1, 1]} : vector<8x1024xbf16> to vector<8x512xbf16>
    %7 = vector.extract_strided_slice %2 {offsets = [0, 20], sizes = [8, 512], strides = [1, 1]} : vector<8x1024xbf16> to vector<8x512xbf16>
    %8 = vector.extract_strided_slice %2 {offsets = [0, 21], sizes = [8, 512], strides = [1, 1]} : vector<8x1024xbf16> to vector<8x512xbf16>
    %9 = vector.extract_strided_slice %2 {offsets = [0, 38], sizes = [8, 512], strides = [1, 1]} : vector<8x1024xbf16> to vector<8x512xbf16>
    %10 = vector.extract_strided_slice %2 {offsets = [0, 39], sizes = [8, 512], strides = [1, 1]} : vector<8x1024xbf16> to vector<8x512xbf16>
    %11 = vector.extract_strided_slice %2 {offsets = [0, 40], sizes = [8, 512], strides = [1, 1]} : vector<8x1024xbf16> to vector<8x512xbf16>
    %12 = tpu.concatenate %3, %4, %5, %6, %7, %8, %9, %10, %11 in 0 : vector<8x512xbf16>, vector<8x512xbf16>, vector<8x512xbf16>, vector<8x512xbf16>, vector<8x512xbf16>, vector<8x512xbf16>, vector<8x512xbf16>, vector<8x512xbf16>, vector<8x512xbf16> -> vector<72x512xbf16>
    %c0_3 = arith.constant 0 : index
    %c0_4 = arith.constant 0 : index
    %13 = vector.load %arg4[%c0_3, %c0_4] : memref<4x72xbf16, #tpu.memory_space<vmem>>, vector<4x72xbf16>
    %cst = arith.constant dense<0.000000e+00> : vector<4x512xf32>
    %14 = tpu.matmul %13, %12, %cst {dimension_numbers = #tpu.dot_dimension_numbers<[1], [0], [0], [1], [0, 0, 1, 1], [], []>} : vector<4x72xbf16>, vector<72x512xbf16>, vector<4x512xf32> -> vector<4x512xf32>
    %15 = arith.truncf %14 : vector<4x512xf32> to vector<4x512xbf16>
    %c0_5 = arith.constant 0 : index
    %c0_6 = arith.constant 0 : index
    %16 = vector.load %arg6[%c0_5, %c0_6] : memref<4x512xbf16, #tpu.memory_space<vmem>>, vector<4x512xbf16>
    tpu.vector_store %arg6[%c0_5, %c0_6], %15 {strides = array<i32>} : memref<4x512xbf16, #tpu.memory_space<vmem>>, vector<4x512xbf16>,
    %c0_i32 = arith.constant 0 : i32
    %17 = arith.cmpi eq, %arg1, %c0_i32 : i32
    %18 = arith.extui %17 : i1 to i32
    %c0_i32_7 = arith.constant 0 : i32
    %19 = arith.cmpi ne, %18, %c0_i32_7 : i32
    scf.if %19 {
      %cst_24 = arith.constant 0.000000e+00 : f32
      %40 = vector.broadcast %cst_24 : f32 to vector<4x1xf32>
      %c0_25 = arith.constant 0 : index
      %c0_26 = arith.constant 0 : index
      %c0_27 = arith.constant 0 : index
      %41 = vector.load %arg7[%c0_25, %c0_26, %c0_27] : memref<1x4x1xf32, #tpu.memory_space<vmem>>, vector<1x4x1xf32>
      %42 = vector.shape_cast %41 : vector<1x4x1xf32> to vector<4x1xf32>
      %43 = vector.shape_cast %40 : vector<4x1xf32> to vector<1x4x1xf32>
      tpu.vector_store %arg7[%c0_25, %c0_26, %c0_27], %43 {strides = array<i32>} : memref<1x4x1xf32, #tpu.memory_space<vmem>>, vector<1x4x1xf32>,
      %cst_28 = arith.constant 0.000000e+00 : f32
      %44 = vector.broadcast %cst_28 : f32 to vector<4x1xf32>
      %c0_29 = arith.constant 0 : index
      %c0_30 = arith.constant 0 : index
      %c0_31 = arith.constant 0 : index
      %45 = vector.load %arg8[%c0_29, %c0_30, %c0_31] : memref<1x4x1xf32, #tpu.memory_space<vmem>>, vector<1x4x1xf32>
      %46 = vector.shape_cast %45 : vector<1x4x1xf32> to vector<4x1xf32>
      %47 = vector.shape_cast %44 : vector<4x1xf32> to vector<1x4x1xf32>
      tpu.vector_store %arg8[%c0_29, %c0_30, %c0_31], %47 {strides = array<i32>} : memref<1x4x1xf32, #tpu.memory_space<vmem>>, vector<1x4x1xf32>,
    } else {
    }
    %c0_8 = arith.constant 0 : index
    %c0_9 = arith.constant 0 : index
    %20 = vector.load %arg5[%c0_8, %c0_9] : memref<1x512xf32, #tpu.memory_space<vmem>>, vector<1x512xf32>
    %21 = vector.broadcast %20 : vector<1x512xf32> to vector<4x512xf32>
    %22 = arith.mulf %14, %21 : vector<4x512xf32>
    %c0_10 = arith.constant 0 : index
    %c0_11 = arith.constant 0 : index
    %c0_12 = arith.constant 0 : index
    %23 = vector.load %arg7[%c0_10, %c0_11, %c0_12] : memref<1x4x1xf32, #tpu.memory_space<vmem>>, vector<1x4x1xf32>
    %24 = vector.shape_cast %23 : vector<1x4x1xf32> to vector<4x1xf32>
    %cst_13 = arith.constant dense<0.000000e+00> : vector<4xf32>
    %25 = vector.multi_reduction <add>, %22, %cst_13 [1] : vector<4x512xf32> to vector<4xf32>
    %26 = vector.shape_cast %25 : vector<4xf32> to vector<4x1xf32>
    %27 = arith.addf %24, %26 : vector<4x1xf32>
    %c0_14 = arith.constant 0 : index
    %c0_15 = arith.constant 0 : index
    %c0_16 = arith.constant 0 : index
    %28 = vector.load %arg7[%c0_14, %c0_15, %c0_16] : memref<1x4x1xf32, #tpu.memory_space<vmem>>, vector<1x4x1xf32>
    %29 = vector.shape_cast %28 : vector<1x4x1xf32> to vector<4x1xf32>
    %30 = vector.shape_cast %27 : vector<4x1xf32> to vector<1x4x1xf32>
    tpu.vector_store %arg7[%c0_14, %c0_15, %c0_16], %30 {strides = array<i32>} : memref<1x4x1xf32, #tpu.memory_space<vmem>>, vector<1x4x1xf32>,
    %c0_17 = arith.constant 0 : index
    %c0_18 = arith.constant 0 : index
    %c0_19 = arith.constant 0 : index
    %31 = vector.load %arg8[%c0_17, %c0_18, %c0_19] : memref<1x4x1xf32, #tpu.memory_space<vmem>>, vector<1x4x1xf32>
    %32 = vector.shape_cast %31 : vector<1x4x1xf32> to vector<4x1xf32>
    %33 = arith.mulf %22, %22 : vector<4x512xf32>
    %cst_20 = arith.constant dense<0.000000e+00> : vector<4xf32>
    %34 = vector.multi_reduction <add>, %33, %cst_20 [1] : vector<4x512xf32> to vector<4xf32>
    %35 = vector.shape_cast %34 : vector<4xf32> to vector<4x1xf32>
    %36 = arith.addf %32, %35 : vector<4x1xf32>
    %c0_21 = arith.constant 0 : index
    %c0_22 = arith.constant 0 : index
    %c0_23 = arith.constant 0 : index
    %37 = vector.load %arg8[%c0_21, %c0_22, %c0_23] : memref<1x4x1xf32, #tpu.memory_space<vmem>>, vector<1x4x1xf32>
    %38 = vector.shape_cast %37 : vector<1x4x1xf32> to vector<4x1xf32>
    %39 = vector.shape_cast %36 : vector<4x1xf32> to vector<1x4x1xf32>
    tpu.vector_store %arg8[%c0_21, %c0_22, %c0_23], %39 {strides = array<i32>} : memref<1x4x1xf32, #tpu.memory_space<vmem>>, vector<1x4x1xf32>,
    return
  }
  func.func @transform_0(%arg0: i32, %arg1: i32) -> (i32, i32) {
    %c1_i32 = arith.constant 1 : i32
    %0 = arith.muli %arg0, %c1_i32 : i32
    %1 = arith.addi %0, %arg1 : i32
    %c0_i32 = arith.constant 0 : i32
    %c0_i32_0 = arith.constant 0 : i32
    return %c0_i32, %1 : i32, i32
  }
  func.func @transform_1(%arg0: i32, %arg1: i32) -> (i32, i32) {
    %c1_i32 = arith.constant 1 : i32
    %0 = arith.muli %arg0, %c1_i32 : i32
    %1 = arith.addi %0, %arg1 : i32
    %c1_i32_0 = arith.constant 1 : i32
    %2 = arith.addi %1, %c1_i32_0 : i32
    %c0_i32 = arith.constant 0 : i32
    %c0_i32_1 = arith.constant 0 : i32
    return %c0_i32, %2 : i32, i32
  }
  func.func @transform_2(%arg0: i32, %arg1: i32) -> (i32, i32) {
    %c0_i32 = arith.constant 0 : i32
    %c0_i32_0 = arith.constant 0 : i32
    %c0_i32_1 = arith.constant 0 : i32
    return %c0_i32, %c0_i32_0 : i32, i32
  }
  func.func @transform_3(%arg0: i32, %arg1: i32) -> (i32, i32) {
    %c1_i32 = arith.constant 1 : i32
    %0 = arith.muli %arg0, %c1_i32 : i32
    %1 = arith.addi %0, %arg1 : i32
    %c0_i32 = arith.constant 0 : i32
    %c0_i32_0 = arith.constant 0 : i32
    return %c0_i32, %1 : i32, i32
  }
  func.func @transform_4(%arg0: i32, %arg1: i32) -> (i32, i32) {
    %c1_i32 = arith.constant 1 : i32
    %0 = arith.muli %arg0, %c1_i32 : i32
    %1 = arith.addi %0, %arg1 : i32
    %c0_i32 = arith.constant 0 : i32
    %c0_i32_0 = arith.constant 0 : i32
    return %c0_i32, %1 : i32, i32
  }
  func.func @transform_5(%arg0: i32, %arg1: i32) -> (i32, i32, i32) {
    %c0_i32 = arith.constant 0 : i32
    %c0_i32_0 = arith.constant 0 : i32
    %c0_i32_1 = arith.constant 0 : i32
    return %arg0, %c0_i32, %c0_i32_0 : i32, i32, i32
  }
  func.func @transform_6(%arg0: i32, %arg1: i32) -> (i32, i32, i32) {
    %c0_i32 = arith.constant 0 : i32
    %c0_i32_0 = arith.constant 0 : i32
    %c0_i32_1 = arith.constant 0 : i32
    return %arg0, %c0_i32, %c0_i32_0 : i32, i32, i32
  }
}

</mosaic_0001>

<llo_original>
// kernel: decoder_forward.3
$region0: #{decoder_forward.3}
  #allocation0 [shape = 'u32[]', space=smem, size = 0x4, offset = 0x4, fixed_abs, tag = 'smem constant byte address 0x4 - core index']
  #allocation1 [shape = 'u32[72,128]{1,0:T(1,128)}', space=vmem, size = 0x9000, scoped, tag = 'internal scratch']
  %s0 = inlined_call_operand.vmem [shape: bf16[4,1024], index: 0, kind: input, shape index: {}]
  %s1 = inlined_call_operand.vmem [shape: f32[4,1], index: 1, kind: input, shape index: {}]
  %s2 = inlined_call_operand.vmem [shape: f32[4,1], index: 2, kind: input, shape index: {}]
  %s3 = inlined_call_operand.vmem [shape: f32[4,1024], index: 3, kind: output, shape index: {}]
  %s4 = sld [smem:[#allocation0]]
  $region45: #{decoder_forward.3} parent=0
    _
  %s6 = ssub.s32 1, %s4
  %s7 = scalar_select 0, %s6, %s4
  loop: start=0, step=1, limit=4
  $region2: #{decoder_forward.3} parent=0 // loop_pre_header
    _
  $region3: #{decoder_forward.3} parent=0 // loop_header
    %s9 = sphi 0, %s13
    %p10 = scmp.ge.s32.totalorder %s9, 4
    %s19 = sphi 0, %s21
    %s22 = sphi 0, %s19
    %s23 = sphi 0, %s22
    %s39 = sphi 0, %s23
    %s43 = sphi 0, %s43
    %s45 = sphi 0, %s43
    %s46 = sphi 0, %s45
    %s60 = sphi 0, %s46
    %s64 = sphi 0, %s64
    %s66 = sphi 0, %s64
    %s67 = sphi 0, %s66
    %s81 = sphi 0, %s67
    %s87 = sphi 0, %s89
    %s90 = sphi 0, %s87
    %s91 = sphi 0, %s90
    %s107 = sphi 0, %s91
  $region4: #{decoder_forward.3} parent=0 // loop_header_branch
    %12 = sbr.rel (%p10) target = $region8
  $region5: #{decoder_forward.3} parent=0 // loop_body
    %s14 = ssub.s32 %s9, 1
    %s15 = ssub.s32 %s9, 2
    %s16 = sadd.s32 %s9, 1
    %s17 = ssub.s32 %s9, %s16
    %p18 = scmp.eq.s32.totalorder %s17, 0
    %s20 = sadd.s32 %s19, 1
    %s21 = scalar_select %p18, %s19, %s20
    %p24 = pneg %p18
    %p25 = scmp.eq.s32.totalorder %s9, 1
    %p26 = por %p24, %p25
    %p27 = scmp.ne.s32.totalorder %s19, %s22
    %p28 = scmp.eq.s32.totalorder %s9, 0
    %p29 = por %p27, %p28
    %p30 = scmp.ne.s32.totalorder %s19, %s22
    %p31 = scmp.eq.s32.totalorder %s14, 1
    %p32 = por %p30, %p31
    %p33 = scmp.ne.s32.totalorder %s22, %s23
    %p34 = scmp.eq.s32.totalorder %s14, 0
    %p35 = por %p33, %p34
    %p36 = scmp.ne.s32.totalorder %s22, %s23
    %p37 = scmp.eq.s32.totalorder %s15, 1
    %p38 = por %p36, %p37
    %p40 = scmp.ne.s32.totalorder %s23, %s39
    %p41 = scmp.eq.s32.totalorder %s15, 0
    %p42 = por %p40, %p41
    %s44 = sadd.s32 %s43, 1
    %p47 = scmp.eq.s32.totalorder %s9, 1
    %p48 = scmp.ne.s32.totalorder %s43, %s45
    %p49 = scmp.eq.s32.totalorder %s9, 0
    %p50 = por %p48, %p49
    %p51 = scmp.ne.s32.totalorder %s43, %s45
    %p52 = scmp.eq.s32.totalorder %s14, 1
    %p53 = por %p51, %p52
    %p54 = scmp.ne.s32.totalorder %s45, %s46
    %p55 = scmp.eq.s32.totalorder %s14, 0
    %p56 = por %p54, %p55
    %p57 = scmp.ne.s32.totalorder %s45, %s46
    %p58 = scmp.eq.s32.totalorder %s15, 1
    %p59 = por %p57, %p58
    %p61 = scmp.ne.s32.totalorder %s46, %s60
    %p62 = scmp.eq.s32.totalorder %s15, 0
    %p63 = por %p61, %p62
    %s65 = sadd.s32 %s64, 1
    %p68 = scmp.eq.s32.totalorder %s9, 1
    %p69 = scmp.ne.s32.totalorder %s64, %s66
    %p70 = scmp.eq.s32.totalorder %s9, 0
    %p71 = por %p69, %p70
    %p72 = scmp.ne.s32.totalorder %s64, %s66
    %p73 = scmp.eq.s32.totalorder %s14, 1
    %p74 = por %p72, %p73
    %p75 = scmp.ne.s32.totalorder %s66, %s67
    %p76 = scmp.eq.s32.totalorder %s14, 0
    %p77 = por %p75, %p76
    %p78 = scmp.ne.s32.totalorder %s66, %s67
    %p79 = scmp.eq.s32.totalorder %s15, 1
    %p80 = por %p78, %p79
    %p82 = scmp.ne.s32.totalorder %s67, %s81
    %p83 = scmp.eq.s32.totalorder %s15, 0
    %p84 = por %p82, %p83
    %s85 = ssub.s32 %s9, %s16
    %p86 = scmp.eq.s32.totalorder %s85, 0
    %s88 = sadd.s32 %s87, 1
    %s89 = scalar_select %p86, %s87, %s88
    %p92 = pneg %p86
    %p93 = scmp.eq.s32.totalorder %s9, 1
    %p94 = por %p92, %p93
    %p95 = scmp.ne.s32.totalorder %s87, %s90
    %p96 = scmp.eq.s32.totalorder %s9, 0
    %p97 = por %p95, %p96
    %p98 = scmp.ne.s32.totalorder %s87, %s90
    %p99 = scmp.eq.s32.totalorder %s14, 1
    %p100 = por %p98, %p99
    %p101 = scmp.ne.s32.totalorder %s90, %s91
    %p102 = scmp.eq.s32.totalorder %s14, 0
    %p103 = por %p101, %p102
    %p104 = scmp.ne.s32.totalorder %s90, %s91
    %p105 = scmp.eq.s32.totalorder %s15, 1
    %p106 = por %p104, %p105
    %p108 = scmp.ne.s32.totalorder %s91, %s107
    %p109 = scmp.eq.s32.totalorder %s15, 0
    %p110 = por %p108, %p109
    %p111 = scmp.le.s32.totalorder 1, %s9
    %p112 = scmp.lt.s32.totalorder %s9, 3
    %p113 = pnand %p111, %p112
    %p114 = pneg %p113
    // Predicated region
    $region9: #{decoder_forward.3} parent=5 // pred_check
      _
    $region10: #{decoder_forward.3} parent=5 // pred_check_branch
      %116 = sbr.rel (%p113) target = $region12
    $region11: #{decoder_forward.3} parent=5 // pred_region
      %s117 = ssub.s32 %s9, 1
      // Predicated region
      $region13: #{decoder_forward.3} parent=11 // pred_check
        %p118 = pneg %p56
      $region14: #{decoder_forward.3} parent=11 // pred_check_branch
        %120 = sbr.rel (%p118) target = $region16
      $region15: #{decoder_forward.3} parent=11 // pred_region
        _
      $region16: #{decoder_forward.3} parent=11 // pred_fallthru
        _
      // Predicated region
      $region17: #{decoder_forward.3} parent=11 // pred_check
        %p121 = pneg %p77
      $region18: #{decoder_forward.3} parent=11 // pred_check_branch
        %123 = sbr.rel (%p121) target = $region20
      $region19: #{decoder_forward.3} parent=11 // pred_region
        _
      $region20: #{decoder_forward.3} parent=11 // pred_fallthru
        _
    $region12: #{decoder_forward.3} parent=5 // pred_fallthru
      _
    %p124 = scmp.lt.s32.totalorder %s9, 2
    // Predicated region
    $region21: #{decoder_forward.3} parent=5 // pred_check
      %p125 = pneg %p124
    $region22: #{decoder_forward.3} parent=5 // pred_check_branch
      %127 = sbr.rel (%p125) target = $region24
    $region23: #{decoder_forward.3} parent=5 // pred_region
      // Predicated region
      $region25: #{decoder_forward.3} parent=23 // pred_check
        %p128 = pneg %p29
      $region26: #{decoder_forward.3} parent=23 // pred_check_branch
        %130 = sbr.rel (%p128) target = $region28
      $region27: #{decoder_forward.3} parent=23 // pred_region
        %s131 = smul.u32 4, %s9
        %p132 = scmp.lt.s32.totalorder %s131, 7
        %s133 = scalar_select %p132, %s131, 7
        %s134 = smul.addr %s133, 2
        %s135 = scalar_lea.vmem %s0, %s134
        %s136 = smul.u32 4, %s9
      $region28: #{decoder_forward.3} parent=23 // pred_fallthru
        _
    $region24: #{decoder_forward.3} parent=5 // pred_fallthru
      _
    %p137 = scmp.le.s32.totalorder 1, %s9
    %p138 = scmp.lt.s32.totalorder %s9, 3
    %p139 = pnand %p137, %p138
    %p140 = pneg %p139
    // Predicated region
    $region29: #{decoder_forward.3} parent=5 // pred_check
      _
    $region30: #{decoder_forward.3} parent=5 // pred_check_branch
      %142 = sbr.rel (%p139) target = $region32
    $region31: #{decoder_forward.3} parent=5 // pred_region
      %s143 = ssub.s32 %s9, 1
      %s144 = smul.u32 4, %s14
      %p145 = scmp.lt.s32.totalorder %s144, 7
      %s146 = scalar_select %p145, %s144, 7
      %s147 = smul.addr %s146, 2
      %s148 = scalar_lea.vmem %s0, %s147
      %p149 = pneg %p35
      %p150 = pneg %p32
      %p151 = pneg %p56
      %p152 = pneg %p53
      %p153 = pneg %p77
      %p154 = pneg %p74
      %p155 = pneg %p103
      %p156 = pneg %p100
      %s157 = smul.u32 4, %s14
      %p158 = scmp.lt.s32.totalorder %s157, 7
      %s159 = scalar_select %p158, %s157, 7
      %s160 = smul.addr %s159, 4
      %s161 = scalar_lea.vmem %s3, %s160
      %s162 = smul.u32 4, %s14
      %p163 = scmp.lt.s32.totalorder %s162, 7
      %s164 = scalar_select %p163, %s162, 7
      %s165 = smul.addr %s164, 2
      %s166 = scalar_lea.vmem %s0, %s165
      %s167 = smul.u32 4, %s14
      %s168 = smul.u32 4, %s14
      %p169 = scmp.lt.s32.totalorder %s168, 7
      %s170 = scalar_select %p169, %s168, 7
      %s171 = smul.addr %s170, 4
      %s172 = scalar_lea.vmem %s3, %s171
      %s173 = smul.u32 4, %s14
      %v174 = vld [vmem:[%s166] sm:$0xff]
      %v175 = vunpack.c.l.bf16 %v174
      %v176 = vunpack.c.h.bf16 %v174
      %v177 = vld [vmem:[%s1] sm:$0xf]
      %179 = vset.pattern.permute.xlu0 0
      %180 = vperm.xlu0 %179, %v177
      %v181 = vpop.permute.xlu0 %180
      %v183 = vunpack.c.l.s4 839922192
      %v184 = vunpack.c.0.s8 %v183
      %v185 = vperm.slane %v181, %v184
      %v187 = vmul.f32 %v175, %v185
      %v188 = vmul.f32 %v176, %v185
      %v189 = vld [vmem:[%s2] sm:$0xf]
      %191 = vset.pattern.permute.xlu0 0
      %192 = vperm.xlu0 %191, %v189
      %v193 = vpop.permute.xlu0 %192
      %v195 = vunpack.c.l.s4 839922192
      %v196 = vunpack.c.0.s8 %v195
      %v197 = vperm.slane %v193, %v196
      %v199 = vadd.f32 %v187, %v197
      %v200 = vadd.f32 %v188, %v197
      %v201 = vmax.f32 %v199, 0.0
      %v202 = vmax.f32 %v200, 0.0
      %203 = vst [vmem:[%s172] sm:$0xff] %v201
      %204 = vst [vmem:[%s172 + $0x8] sm:$0xff] %v202
      %s205 = smul.u32 4, %s14
      %p206 = scmp.lt.s32.totalorder %s205, 7
      %s207 = scalar_select %p206, %s205, 7
      %s208 = smul.addr %s207, 4
      %s209 = scalar_lea.vmem %s3, %s208
      // Predicated region
      $region33: #{decoder_forward.3} parent=31 // pred_check
        %p210 = pneg %p100
      $region34: #{decoder_forward.3} parent=31 // pred_check_branch
        %212 = sbr.rel (%p210) target = $region36
      $region35: #{decoder_forward.3} parent=31 // pred_region
        %s213 = smul.u32 4, %s14
      $region36: #{decoder_forward.3} parent=31 // pred_fallthru
        _
    $region32: #{decoder_forward.3} parent=5 // pred_fallthru
      _
    %p214 = scmp.le.s32.totalorder 2, %s9
    // Predicated region
    $region37: #{decoder_forward.3} parent=5 // pred_check
      %p215 = pneg %p214
    $region38: #{decoder_forward.3} parent=5 // pred_check_branch
      %217 = sbr.rel (%p215) target = $region40
    $region39: #{decoder_forward.3} parent=5 // pred_region
      %s218 = ssub.s32 %s9, 2
      // Predicated region
      $region41: #{decoder_forward.3} parent=39 // pred_check
        %p219 = pneg %p106
      $region42: #{decoder_forward.3} parent=39 // pred_check_branch
        %221 = sbr.rel (%p219) target = $region44
      $region43: #{decoder_forward.3} parent=39 // pred_region
        %s222 = smul.u32 4, %s15
        %p223 = scmp.lt.s32.totalorder %s222, 7
        %s224 = scalar_select %p223, %s222, 7
        %s225 = smul.addr %s224, 4
        %s226 = scalar_lea.vmem %s3, %s225
      $region44: #{decoder_forward.3} parent=39 // pred_fallthru
        _
    $region40: #{decoder_forward.3} parent=5 // pred_fallthru
      _
  $region6: #{decoder_forward.3} parent=0 // loop_footer
    %s13 = sadd.s32 1, %s9
  $region7: #{decoder_forward.3} parent=0 // loop_footer_branch
    %8 = sbr.rel target = $region3
  $region8: #{decoder_forward.3} parent=0 // loop_exit
    _

// kernel: decoder_forward.2
$region0: #{decoder_forward.2}
  #allocation0 [shape = 'u32[]', space=smem, size = 0x4, offset = 0x4, fixed_abs, tag = 'smem constant byte address 0x4 - core index']
  #allocation1 [shape = 'u32[72,128]{1,0:T(1,128)}', space=vmem, size = 0x9000, scoped, tag = 'internal scratch']
  %s0 = inlined_call_operand.vmem [shape: bf16[8,1536], index: 0, kind: input, shape index: {}, may-alias: {0,1}]
  %s1 = inlined_call_operand.vmem [shape: bf16[8,1536], index: 1, kind: input, shape index: {}, may-alias: {0,1}]
  %s2 = inlined_call_operand.vmem [shape: bf16[4,72], index: 2, kind: input, shape index: {}]
  %s3 = inlined_call_operand.vmem [shape: f32[1,1024], index: 3, kind: input, shape index: {}]
  %s4 = inlined_call_operand.vmem [shape: bf16[4,1024], index: 4, kind: output, shape index: {0}]
  %s5 = inlined_call_operand.vmem [shape: f32[2,4,1], index: 5, kind: output, shape index: {1}]
  %s6 = inlined_call_operand.vmem [shape: f32[2,4,1], index: 6, kind: output, shape index: {2}]
  %7 = xla_tuple %s4, %s5, %s6
  %s8 = sld [smem:[#allocation0]]
  $region69: #{decoder_forward.2} parent=0
    _
  %s10 = ssub.s32 1, %s8
  %s11 = scalar_select 0, %s10, %s8
  loop: start=0, step=1, limit=4
  $region2: #{decoder_forward.2} parent=0 // loop_pre_header
    _
  $region3: #{decoder_forward.2} parent=0 // loop_header
    %s13 = sphi 0, %s17
    %p14 = scmp.ge.s32.totalorder %s13, 4
    %s20 = sphi 0, %s32
    %s21 = sphi 0, %s28
    %s22 = sphi 0, %s20
    %s23 = sphi 0, %s21
    %s24 = sphi 0, %s22
    %s25 = sphi 0, %s23
    %s37 = sphi 0, %s39
    %s40 = sphi 0, %s37
    %s41 = sphi 0, %s40
    %s57 = sphi 0, %s41
    %s67 = sphi 0, %s69
    %s70 = sphi 0, %s67
    %s71 = sphi 0, %s70
    %s87 = sphi 0, %s71
    %s91 = sphi 0, %s91
    %s93 = sphi 0, %s91
    %s94 = sphi 0, %s93
    %s108 = sphi 0, %s94
    %s116 = sphi 0, %s118
    %s119 = sphi 0, %s116
    %s120 = sphi 0, %s119
    %s136 = sphi 0, %s120
    %s144 = sphi 0, %s146
    %s147 = sphi 0, %s144
    %s148 = sphi 0, %s147
    %s164 = sphi 0, %s148
    %s170 = sphi 0, %s172
    %s173 = sphi 0, %s170
    %s174 = sphi 0, %s173
    %s190 = sphi 0, %s174
    %s196 = sphi 0, %s198
    %s199 = sphi 0, %s196
    %s200 = sphi 0, %s199
    %s216 = sphi 0, %s200
  $region4: #{decoder_forward.2} parent=0 // loop_header_branch
    %16 = sbr.rel (%p14) target = $region8
  $region5: #{decoder_forward.2} parent=0 // loop_body
    %s18 = ssub.s32 %s13, 1
    %s19 = ssub.s32 %s13, 2
    %s26 = sadd.s32 1, %s21
    %p27 = scmp.ge.s32.totalorder %s26, 1
    %s28 = scalar_select %p27, 0, %s26
    %s29 = sadd.s32 1, %s20
    %s30 = scalar_select %p27, %s29, %s20
    %p31 = scmp.ge.s32.totalorder %s30, 2
    %s32 = scalar_select %p31, 0, %s30
    %s33 = sadd.s32 %s20, %s21
    %s34 = sadd.s32 %s32, %s28
    %s35 = ssub.s32 %s33, %s34
    %p36 = scmp.eq.s32.totalorder %s35, 0
    %s38 = sadd.s32 %s37, 1
    %s39 = scalar_select %p36, %s37, %s38
    %p42 = pneg %p36
    %p43 = scmp.eq.s32.totalorder %s13, 1
    %p44 = por %p42, %p43
    %p45 = scmp.ne.s32.totalorder %s37, %s40
    %p46 = scmp.eq.s32.totalorder %s13, 0
    %p47 = por %p45, %p46
    %p48 = scmp.ne.s32.totalorder %s37, %s40
    %p49 = scmp.eq.s32.totalorder %s18, 1
    %p50 = por %p48, %p49
    %p51 = scmp.ne.s32.totalorder %s40, %s41
    %p52 = scmp.eq.s32.totalorder %s18, 0
    %p53 = por %p51, %p52
    %p54 = scmp.ne.s32.totalorder %s40, %s41
    %p55 = scmp.eq.s32.totalorder %s19, 1
    %p56 = por %p54, %p55
    %p58 = scmp.ne.s32.totalorder %s41, %s57
    %p59 = scmp.eq.s32.totalorder %s19, 0
    %p60 = por %p58, %p59
    %s61 = sadd.s32 %s20, %s21
    %s62 = sadd.s32 %s61, 1
    %s63 = sadd.s32 %s32, %s28
    %s64 = sadd.s32 %s63, 1
    %s65 = ssub.s32 %s62, %s64
    %p66 = scmp.eq.s32.totalorder %s65, 0
    %s68 = sadd.s32 %s67, 1
    %s69 = scalar_select %p66, %s67, %s68
    %p72 = pneg %p66
    %p73 = scmp.eq.s32.totalorder %s13, 1
    %p74 = por %p72, %p73
    %p75 = scmp.ne.s32.totalorder %s67, %s70
    %p76 = scmp.eq.s32.totalorder %s13, 0
    %p77 = por %p75, %p76
    %p78 = scmp.ne.s32.totalorder %s67, %s70
    %p79 = scmp.eq.s32.totalorder %s18, 1
    %p80 = por %p78, %p79
    %p81 = scmp.ne.s32.totalorder %s70, %s71
    %p82 = scmp.eq.s32.totalorder %s18, 0
    %p83 = por %p81, %p82
    %p84 = scmp.ne.s32.totalorder %s70, %s71
    %p85 = scmp.eq.s32.totalorder %s19, 1
    %p86 = por %p84, %p85
    %p88 = scmp.ne.s32.totalorder %s71, %s87
    %p89 = scmp.eq.s32.totalorder %s19, 0
    %p90 = por %p88, %p89
    %s92 = sadd.s32 %s91, 1
    %p95 = scmp.eq.s32.totalorder %s13, 1
    %p96 = scmp.ne.s32.totalorder %s91, %s93
    %p97 = scmp.eq.s32.totalorder %s13, 0
    %p98 = por %p96, %p97
    %p99 = scmp.ne.s32.totalorder %s91, %s93
    %p100 = scmp.eq.s32.totalorder %s18, 1
    %p101 = por %p99, %p100
    %p102 = scmp.ne.s32.totalorder %s93, %s94
    %p103 = scmp.eq.s32.totalorder %s18, 0
    %p104 = por %p102, %p103
    %p105 = scmp.ne.s32.totalorder %s93, %s94
    %p106 = scmp.eq.s32.totalorder %s19, 1
    %p107 = por %p105, %p106
    %p109 = scmp.ne.s32.totalorder %s94, %s108
    %p110 = scmp.eq.s32.totalorder %s19, 0
    %p111 = por %p109, %p110
    %s112 = sadd.s32 %s20, %s21
    %s113 = sadd.s32 %s32, %s28
    %s114 = ssub.s32 %s112, %s113
    %p115 = scmp.eq.s32.totalorder %s114, 0
    %s117 = sadd.s32 %s116, 1
    %s118 = scalar_select %p115, %s116, %s117
    %p121 = pneg %p115
    %p122 = scmp.eq.s32.totalorder %s13, 1
    %p123 = por %p121, %p122
    %p124 = scmp.ne.s32.totalorder %s116, %s119
    %p125 = scmp.eq.s32.totalorder %s13, 0
    %p126 = por %p124, %p125
    %p127 = scmp.ne.s32.totalorder %s116, %s119
    %p128 = scmp.eq.s32.totalorder %s18, 1
    %p129 = por %p127, %p128
    %p130 = scmp.ne.s32.totalorder %s119, %s120
    %p131 = scmp.eq.s32.totalorder %s18, 0
    %p132 = por %p130, %p131
    %p133 = scmp.ne.s32.totalorder %s119, %s120
    %p134 = scmp.eq.s32.totalorder %s19, 1
    %p135 = por %p133, %p134
    %p137 = scmp.ne.s32.totalorder %s120, %s136
    %p138 = scmp.eq.s32.totalorder %s19, 0
    %p139 = por %p137, %p138
    %s140 = sadd.s32 %s20, %s21
    %s141 = sadd.s32 %s32, %s28
    %s142 = ssub.s32 %s140, %s141
    %p143 = scmp.eq.s32.totalorder %s142, 0
    %s145 = sadd.s32 %s144, 1
    %s146 = scalar_select %p143, %s144, %s145
    %p149 = pneg %p143
    %p150 = scmp.eq.s32.totalorder %s13, 1
    %p151 = por %p149, %p150
    %p152 = scmp.ne.s32.totalorder %s144, %s147
    %p153 = scmp.eq.s32.totalorder %s13, 0
    %p154 = por %p152, %p153
    %p155 = scmp.ne.s32.totalorder %s144, %s147
    %p156 = scmp.eq.s32.totalorder %s18, 1
    %p157 = por %p155, %p156
    %p158 = scmp.ne.s32.totalorder %s147, %s148
    %p159 = scmp.eq.s32.totalorder %s18, 0
    %p160 = por %p158, %p159
    %p161 = scmp.ne.s32.totalorder %s147, %s148
    %p162 = scmp.eq.s32.totalorder %s19, 1
    %p163 = por %p161, %p162
    %p165 = scmp.ne.s32.totalorder %s148, %s164
    %p166 = scmp.eq.s32.totalorder %s19, 0
    %p167 = por %p165, %p166
    %s168 = ssub.s32 %s20, %s32
    %p169 = scmp.eq.s32.totalorder %s168, 0
    %s171 = sadd.s32 %s170, 1
    %s172 = scalar_select %p169, %s170, %s171
    %p175 = pneg %p169
    %p176 = scmp.eq.s32.totalorder %s13, 1
    %p177 = por %p175, %p176
    %p178 = scmp.ne.s32.totalorder %s170, %s173
    %p179 = scmp.eq.s32.totalorder %s13, 0
    %p180 = por %p178, %p179
    %p181 = scmp.ne.s32.totalorder %s170, %s173
    %p182 = scmp.eq.s32.totalorder %s18, 1
    %p183 = por %p181, %p182
    %p184 = scmp.ne.s32.totalorder %s173, %s174
    %p185 = scmp.eq.s32.totalorder %s18, 0
    %p186 = por %p184, %p185
    %p187 = scmp.ne.s32.totalorder %s173, %s174
    %p188 = scmp.eq.s32.totalorder %s19, 1
    %p189 = por %p187, %p188
    %p191 = scmp.ne.s32.totalorder %s174, %s190
    %p192 = scmp.eq.s32.totalorder %s19, 0
    %p193 = por %p191, %p192
    %s194 = ssub.s32 %s20, %s32
    %p195 = scmp.eq.s32.totalorder %s194, 0
    %s197 = sadd.s32 %s196, 1
    %s198 = scalar_select %p195, %s196, %s197
    %p201 = pneg %p195
    %p202 = scmp.eq.s32.totalorder %s13, 1
    %p203 = por %p201, %p202
    %p204 = scmp.ne.s32.totalorder %s196, %s199
    %p205 = scmp.eq.s32.totalorder %s13, 0
    %p206 = por %p204, %p205
    %p207 = scmp.ne.s32.totalorder %s196, %s199
    %p208 = scmp.eq.s32.totalorder %s18, 1
    %p209 = por %p207, %p208
    %p210 = scmp.ne.s32.totalorder %s199, %s200
    %p211 = scmp.eq.s32.totalorder %s18, 0
    %p212 = por %p210, %p211
    %p213 = scmp.ne.s32.totalorder %s199, %s200
    %p214 = scmp.eq.s32.totalorder %s19, 1
    %p215 = por %p213, %p214
    %p217 = scmp.ne.s32.totalorder %s200, %s216
    %p218 = scmp.eq.s32.totalorder %s19, 0
    %p219 = por %p217, %p218
    %p220 = scmp.le.s32.totalorder 1, %s13
    %p221 = scmp.lt.s32.totalorder %s13, 3
    %p222 = pnand %p220, %p221
    %p223 = pneg %p222
    // Predicated region
    $region9: #{decoder_forward.2} parent=5 // pred_check
      _
    $region10: #{decoder_forward.2} parent=5 // pred_check_branch
      %225 = sbr.rel (%p222) target = $region12
    $region11: #{decoder_forward.2} parent=5 // pred_region
      %s226 = ssub.s32 %s13, 1
      // Predicated region
      $region13: #{decoder_forward.2} parent=11 // pred_check
        %p227 = pneg %p104
      $region14: #{decoder_forward.2} parent=11 // pred_check_branch
        %229 = sbr.rel (%p227) target = $region16
      $region15: #{decoder_forward.2} parent=11 // pred_region
        _
      $region16: #{decoder_forward.2} parent=11 // pred_fallthru
        _
    $region12: #{decoder_forward.2} parent=5 // pred_fallthru
      _
    %p230 = scmp.lt.s32.totalorder %s13, 2
    // Predicated region
    $region17: #{decoder_forward.2} parent=5 // pred_check
      %p231 = pneg %p230
    $region18: #{decoder_forward.2} parent=5 // pred_check_branch
      %233 = sbr.rel (%p231) target = $region20
    $region19: #{decoder_forward.2} parent=5 // pred_region
      // Predicated region
      $region21: #{decoder_forward.2} parent=19 // pred_check
        %p234 = pneg %p47
      $region22: #{decoder_forward.2} parent=19 // pred_check_branch
        %236 = sbr.rel (%p234) target = $region24
      $region23: #{decoder_forward.2} parent=19 // pred_region
        %s237 = sadd.s32 %s20, %s21
        %s238 = smul.u32 4, %s237
        %p239 = scmp.lt.s32.totalorder %s238, 11
        %s240 = scalar_select %p239, %s238, 11
        %s241 = smul.addr %s240, 4
        %s242 = scalar_lea.vmem %s0, %s241
        %s243 = sadd.s32 %s20, %s21
        %s244 = smul.u32 4, %s243
      $region24: #{decoder_forward.2} parent=19 // pred_fallthru
        _
      // Predicated region
      $region25: #{decoder_forward.2} parent=19 // pred_check
        %p245 = pneg %p77
      $region26: #{decoder_forward.2} parent=19 // pred_check_branch
        %247 = sbr.rel (%p245) target = $region28
      $region27: #{decoder_forward.2} parent=19 // pred_region
        %s248 = sadd.s32 %s20, %s21
        %s249 = sadd.s32 %s248, 1
        %s250 = smul.u32 4, %s249
        %p251 = scmp.lt.s32.totalorder %s250, 11
        %s252 = scalar_select %p251, %s250, 11
        %s253 = smul.addr %s252, 4
        %s254 = scalar_lea.vmem %s1, %s253
        %s255 = sadd.s32 %s20, %s21
        %s256 = sadd.s32 %s255, 1
        %s257 = smul.u32 4, %s256
      $region28: #{decoder_forward.2} parent=19 // pred_fallthru
        _
      // Predicated region
      $region29: #{decoder_forward.2} parent=19 // pred_check
        %p258 = pneg %p126
      $region30: #{decoder_forward.2} parent=19 // pred_check_branch
        %260 = sbr.rel (%p258) target = $region32
      $region31: #{decoder_forward.2} parent=19 // pred_region
        %s261 = sadd.s32 %s20, %s21
        %s262 = smul.u32 4, %s261
        %p263 = scmp.lt.s32.totalorder %s262, 7
        %s264 = scalar_select %p263, %s262, 7
        %s265 = scalar_lea.vmem %s3, %s264
        %s266 = sadd.s32 %s20, %s21
        %s267 = smul.u32 4, %s266
      $region32: #{decoder_forward.2} parent=19 // pred_fallthru
        _
    $region20: #{decoder_forward.2} parent=5 // pred_fallthru
      _
    %p268 = scmp.le.s32.totalorder 1, %s13
    %p269 = scmp.lt.s32.totalorder %s13, 3
    %p270 = pnand %p268, %p269
    %p271 = pneg %p270
    // Predicated region
    $region33: #{decoder_forward.2} parent=5 // pred_check
      _
    $region34: #{decoder_forward.2} parent=5 // pred_check_branch
      %273 = sbr.rel (%p270) target = $region36
    $region35: #{decoder_forward.2} parent=5 // pred_region
      %s274 = ssub.s32 %s13, 1
      %s275 = sadd.s32 %s22, %s23
      %s276 = smul.u32 4, %s275
      %p277 = scmp.lt.s32.totalorder %s276, 11
      %s278 = scalar_select %p277, %s276, 11
      %s279 = smul.addr %s278, 4
      %s280 = scalar_lea.vmem %s0, %s279
      %p281 = pneg %p53
      %p282 = pneg %p50
      %s283 = sadd.s32 %s22, %s23
      %s284 = sadd.s32 %s283, 1
      %s285 = smul.u32 4, %s284
      %p286 = scmp.lt.s32.totalorder %s285, 11
      %s287 = scalar_select %p286, %s285, 11
      %s288 = smul.addr %s287, 4
      %s289 = scalar_lea.vmem %s1, %s288
      %p290 = pneg %p83
      %p291 = pneg %p80
      %p292 = pneg %p104
      %p293 = pneg %p101
      %s294 = sadd.s32 %s22, %s23
      %s295 = smul.u32 4, %s294
      %p296 = scmp.lt.s32.totalorder %s295, 7
      %s297 = scalar_select %p296, %s295, 7
      %s298 = scalar_lea.vmem %s3, %s297
      %p299 = pneg %p132
      %p300 = pneg %p129
      %p301 = pneg %p160
      %p302 = pneg %p157
      %s303 = sadd.s32 %s22, %s23
      %s304 = smul.u32 4, %s303
      %p305 = scmp.lt.s32.totalorder %s304, 7
      %s306 = scalar_select %p305, %s304, 7
      %s307 = smul.addr %s306, 2
      %s308 = scalar_lea.vmem %s4, %s307
      %p309 = pneg %p186
      %p310 = pneg %p183
      %p311 = scmp.lt.s32.totalorder %s22, 1
      %s312 = scalar_select %p311, %s22, 1
      %s313 = smul.addr %s312, 4
      %s314 = scalar_lea.vmem %s5, %s313
      %p315 = pneg %p212
      %p316 = pneg %p209
      %p317 = scmp.lt.s32.totalorder %s22, 1
      %s318 = scalar_select %p317, %s22, 1
      %s319 = smul.addr %s318, 4
      %s320 = scalar_lea.vmem %s6, %s319
      %s321 = sadd.s32 %s22, %s23
      %s322 = smul.u32 4, %s321
      %p323 = scmp.lt.s32.totalorder %s322, 11
      %s324 = scalar_select %p323, %s322, 11
      %s325 = smul.addr %s324, 4
      %s326 = scalar_lea.vmem %s0, %s325
      %s327 = sadd.s32 %s22, %s23
      %s328 = smul.u32 4, %s327
      %s329 = sadd.s32 %s22, %s23
      %s330 = sadd.s32 %s329, 1
      %s331 = smul.u32 4, %s330
      %p332 = scmp.lt.s32.totalorder %s331, 11
      %s333 = scalar_select %p332, %s331, 11
      %s334 = smul.addr %s333, 4
      %s335 = scalar_lea.vmem %s1, %s334
      %s336 = sadd.s32 %s22, %s23
      %s337 = sadd.s32 %s336, 1
      %s338 = smul.u32 4, %s337
      %s339 = sadd.s32 %s22, %s23
      %s340 = smul.u32 4, %s339
      %p341 = scmp.lt.s32.totalorder %s340, 7
      %s342 = scalar_select %p341, %s340, 7
      %s343 = scalar_lea.vmem %s3, %s342
      %s344 = sadd.s32 %s22, %s23
      %s345 = smul.u32 4, %s344
      %s346 = sadd.s32 %s22, %s23
      %s347 = smul.u32 4, %s346
      %p348 = scmp.lt.s32.totalorder %s347, 7
      %s349 = scalar_select %p348, %s347, 7
      %s350 = smul.addr %s349, 2
      %s351 = scalar_lea.vmem %s4, %s350
      %s352 = sadd.s32 %s22, %s23
      %s353 = smul.u32 4, %s352
      %p354 = scmp.lt.s32.totalorder %s22, 1
      %s355 = scalar_select %p354, %s22, 1
      %s356 = smul.addr %s355, 4
      %s357 = scalar_lea.vmem %s5, %s356
      %p358 = scmp.lt.s32.totalorder %s22, 1
      %s359 = scalar_select %p358, %s22, 1
      %s360 = smul.addr %s359, 4
      %s361 = scalar_lea.vmem %s6, %s360
      %v363 = vld [vmem:[%s326] sm:$0xff]
      %v364 = vld [vmem:[%s326 + $0x8] sm:$0xff]
      %v365 = vld [vmem:[%s335] sm:$0xff]
      %v368 = vunpack.c.l.b16 %v363
      %v369 = vunpack.c.h.b16 %v363
      %v370 = vunpack.c.l.b16 %v364
      %v371 = vunpack.c.h.b16 %v364
      %v372 = vpack.c.b16 %v368, %v368
      %v373 = vpack.c.b16 %v369, %v369
      %v374 = vpack.c.b16 %v370, %v370
      %v375 = vpack.c.b16 %v371, %v371
      %v377 = vunpack.c.l.b16 %v365
      %v378 = vpack.c.b16 %v377, %v377
      %v379 = vrot.slane %v372, 4
      %v380 = vrot.slane %v373, 4
      %v381 = vrot.slane %v374, 4
      %v382 = vrot.slane %v375, 4
      %v383 = vrot.slane %v378, 4
      %384 = vrot.lane.b32.xlu0 %v379, 127
      %v385 = vpop.permute.xlu0 %384
      %386 = vrot.lane.b32.xlu0 %v380, 127
      %v387 = vpop.permute.xlu0 %386
      %388 = vrot.lane.b32.xlu0 %v381, 127
      %v389 = vpop.permute.xlu0 %388
      %390 = vrot.lane.b32.xlu0 %v382, 127
      %v391 = vpop.permute.xlu0 %390
      %392 = vrot.lane.b32.xlu0 %v383, 127
      %v393 = vpop.permute.xlu0 %392
      %vm394 = vcmask 1039360
      %v395 = vsel %vm394, %v385, %v387
      %v396 = vsel %vm394, %v387, %v389
      %v397 = vsel %vm394, %v389, %v391
      %v398 = vsel %vm394, %v391, %v393
      %399 = vrot.lane.b32.xlu0 %v372, 126
      %v400 = vpop.permute.xlu0 %399
      %401 = vrot.lane.b32.xlu0 %v373, 126
      %v402 = vpop.permute.xlu0 %401
      %403 = vrot.lane.b32.xlu0 %v374, 126
      %v404 = vpop.permute.xlu0 %403
      %405 = vrot.lane.b32.xlu0 %v375, 126
      %v406 = vpop.permute.xlu0 %405
      %407 = vrot.lane.b32.xlu0 %v378, 126
      %v408 = vpop.permute.xlu0 %407
      %vm409 = vcmask 1031168
      %v410 = vsel %vm409, %v400, %v402
      %v411 = vsel %vm409, %v402, %v404
      %v412 = vsel %vm409, %v404, %v406
      %v413 = vsel %vm409, %v406, %v408
      %414 = vrot.lane.b32.xlu0 %v379, 109
      %v415 = vpop.permute.xlu0 %414
      %416 = vrot.lane.b32.xlu0 %v380, 109
      %v417 = vpop.permute.xlu0 %416
      %418 = vrot.lane.b32.xlu0 %v381, 109
      %v419 = vpop.permute.xlu0 %418
      %420 = vrot.lane.b32.xlu0 %v382, 109
      %v421 = vpop.permute.xlu0 %420
      %422 = vrot.lane.b32.xlu0 %v383, 109
      %v423 = vpop.permute.xlu0 %422
      %vm424 = vcmask 891904
      %v425 = vsel %vm424, %v415, %v417
      %v426 = vsel %vm424, %v417, %v419
      %v427 = vsel %vm424, %v419, %v421
      %v428 = vsel %vm424, %v421, %v423
      %429 = vrot.lane.b32.xlu0 %v372, 108
      %v430 = vpop.permute.xlu0 %429
      %431 = vrot.lane.b32.xlu0 %v373, 108
      %v432 = vpop.permute.xlu0 %431
      %433 = vrot.lane.b32.xlu0 %v374, 108
      %v434 = vpop.permute.xlu0 %433
      %435 = vrot.lane.b32.xlu0 %v375, 108
      %v436 = vpop.permute.xlu0 %435
      %437 = vrot.lane.b32.xlu0 %v378, 108
      %v438 = vpop.permute.xlu0 %437
      %vm439 = vcmask 883712
      %v440 = vsel %vm439, %v430, %v432
      %v441 = vsel %vm439, %v432, %v434
      %v442 = vsel %vm439, %v434, %v436
      %v443 = vsel %vm439, %v436, %v438
      %444 = vrot.lane.b32.xlu0 %v379, 107
      %v445 = vpop.permute.xlu0 %444
      %446 = vrot.lane.b32.xlu0 %v380, 107
      %v447 = vpop.permute.xlu0 %446
      %448 = vrot.lane.b32.xlu0 %v381, 107
      %v449 = vpop.permute.xlu0 %448
      %450 = vrot.lane.b32.xlu0 %v382, 107
      %v451 = vpop.permute.xlu0 %450
      %452 = vrot.lane.b32.xlu0 %v383, 107
      %v453 = vpop.permute.xlu0 %452
      %vm454 = vcmask 875520
      %v455 = vsel %vm454, %v445, %v447
      %v456 = vsel %vm454, %v447, %v449
      %v457 = vsel %vm454, %v449, %v451
      %v458 = vsel %vm454, %v451, %v453
      %459 = vrot.lane.b32.xlu0 %v372, 90
      %v460 = vpop.permute.xlu0 %459
      %461 = vrot.lane.b32.xlu0 %v373, 90
      %v462 = vpop.permute.xlu0 %461
      %463 = vrot.lane.b32.xlu0 %v374, 90
      %v464 = vpop.permute.xlu0 %463
      %465 = vrot.lane.b32.xlu0 %v375, 90
      %v466 = vpop.permute.xlu0 %465
      %467 = vrot.lane.b32.xlu0 %v378, 90
      %v468 = vpop.permute.xlu0 %467
      %vm469 = vcmask 736256
      %v470 = vsel %vm469, %v460, %v462
      %v471 = vsel %vm469, %v462, %v464
      %v472 = vsel %vm469, %v464, %v466
      %v473 = vsel %vm469, %v466, %v468
      %474 = vrot.lane.b32.xlu0 %v379, 89
      %v475 = vpop.permute.xlu0 %474
      %476 = vrot.lane.b32.xlu0 %v380, 89
      %v477 = vpop.permute.xlu0 %476
      %478 = vrot.lane.b32.xlu0 %v381, 89
      %v479 = vpop.permute.xlu0 %478
      %480 = vrot.lane.b32.xlu0 %v382, 89
      %v481 = vpop.permute.xlu0 %480
      %482 = vrot.lane.b32.xlu0 %v383, 89
      %v483 = vpop.permute.xlu0 %482
      %vm484 = vcmask 728064
      %v485 = vsel %vm484, %v475, %v477
      %v486 = vsel %vm484, %v477, %v479
      %v487 = vsel %vm484, %v479, %v481
      %v488 = vsel %vm484, %v481, %v483
      %489 = vrot.lane.b32.xlu0 %v372, 88
      %v490 = vpop.permute.xlu0 %489
      %491 = vrot.lane.b32.xlu0 %v373, 88
      %v492 = vpop.permute.xlu0 %491
      %493 = vrot.lane.b32.xlu0 %v374, 88
      %v494 = vpop.permute.xlu0 %493
      %495 = vrot.lane.b32.xlu0 %v375, 88
      %v496 = vpop.permute.xlu0 %495
      %497 = vrot.lane.b32.xlu0 %v378, 88
      %v498 = vpop.permute.xlu0 %497
      %vm499 = vcmask 719872
      %v500 = vsel %vm499, %v490, %v492
      %v501 = vsel %vm499, %v492, %v494
      %v502 = vsel %vm499, %v494, %v496
      %v503 = vsel %vm499, %v496, %v498
      %vm504 = vcmask 1043456
      %v507 = vsel %vm504, %v372, %v395
      %v511 = vsel %vm504, %v373, %v396
      %v515 = vsel %vm504, %v374, %v397
      %v519 = vsel %vm504, %v375, %v398
      %v523 = vsel %vm504, %v410, %v425
      %v527 = vsel %vm504, %v411, %v426
      %v531 = vsel %vm504, %v412, %v427
      %v535 = vsel %vm504, %v413, %v428
      %v539 = vsel %vm504, %v440, %v455
      %v543 = vsel %vm504, %v441, %v456
      %v547 = vsel %vm504, %v442, %v457
      %v551 = vsel %vm504, %v443, %v458
      %v555 = vsel %vm504, %v470, %v485
      %v559 = vsel %vm504, %v471, %v486
      %v563 = vsel %vm504, %v472, %v487
      %v567 = vsel %vm504, %v473, %v488
      %v569 = vld [vmem:[%s2] sm:$0x3]
      %vm570 = vcmask 588800
      %v572 = vsel %vm570, %v569, 0
      %v575 = vsel %vm504, %v500, 0
      %v578 = vsel %vm504, %v501, 0
      %v581 = vsel %vm504, %v502, 0
      %v584 = vsel %vm504, %v503, 0
      %586 = vmatpush.bf16.msra.mxu0 0
      %587 = vmatpush.bf16.msra.mxu0 0
      %588 = vmatpush.bf16.msra.mxu0 0
      %589 = vmatpush.bf16.msra.mxu0 %v575
      %590 = vmatpush.bf16.msra.mxu0 %v555
      %591 = vmatpush.bf16.msra.mxu0 %v539
      %592 = vmatpush.bf16.msra.mxu0 %v523
      %593 = vmatpush.bf16.msra.mxu0 %v507
      %594 = vmatmul.bf16.gmra.mxu0 %v572
      %v595 = vpop.f32.mrf.mxu0
      %v596 = vadd.f32 0.0, %v595
      %v597 = vpop.f32.mrf.mxu0
      %598 = vdwg.mxu0
      %599 = vmatpush.bf16.msra.mxu0 0
      %600 = vmatpush.bf16.msra.mxu0 0
      %601 = vmatpush.bf16.msra.mxu0 0
      %602 = vmatpush.bf16.msra.mxu0 %v578
      %603 = vmatpush.bf16.msra.mxu0 %v559
      %604 = vmatpush.bf16.msra.mxu0 %v543
      %605 = vmatpush.bf16.msra.mxu0 %v527
      %606 = vmatpush.bf16.msra.mxu0 %v511
      %607 = vmatmul.bf16.gmra.mxu0 %v572
      %v608 = vpop.f32.mrf.mxu0
      %v609 = vadd.f32 0.0, %v608
      %v610 = vpop.f32.mrf.mxu0
      %611 = vdwg.mxu0
      %612 = vmatpush.bf16.msra.mxu0 0
      %613 = vmatpush.bf16.msra.mxu0 0
      %614 = vmatpush.bf16.msra.mxu0 0
      %615 = vmatpush.bf16.msra.mxu0 %v581
      %616 = vmatpush.bf16.msra.mxu0 %v563
      %617 = vmatpush.bf16.msra.mxu0 %v547
      %618 = vmatpush.bf16.msra.mxu0 %v531
      %619 = vmatpush.bf16.msra.mxu0 %v515
      %620 = vmatmul.bf16.gmra.mxu0 %v572
      %v621 = vpop.f32.mrf.mxu0
      %v622 = vadd.f32 0.0, %v621
      %v623 = vpop.f32.mrf.mxu0
      %624 = vdwg.mxu0
      %625 = vmatpush.bf16.msra.mxu0 0
      %626 = vmatpush.bf16.msra.mxu0 0
      %627 = vmatpush.bf16.msra.mxu0 0
      %628 = vmatpush.bf16.msra.mxu0 %v584
      %629 = vmatpush.bf16.msra.mxu0 %v567
      %630 = vmatpush.bf16.msra.mxu0 %v551
      %631 = vmatpush.bf16.msra.mxu0 %v535
      %632 = vmatpush.bf16.msra.mxu0 %v519
      %633 = vmatmul.bf16.gmra.mxu0 %v572
      %v634 = vpop.f32.mrf.mxu0
      %v635 = vadd.f32 0.0, %v634
      %v636 = vpop.f32.mrf.mxu0
      %637 = vdwg.mxu0
      %v638 = vpack.c.bf16 %v609, %v596
      %v639 = vpack.c.bf16 %v635, %v622
      %v642 = vrot.slane %v638, 2
      %v643 = vrot.slane %v639, 4
      %v644 = vrot.slane %v639, 6
      %vm645 = vcmask 1041408
      %v648 = vsel %vm645, %v638, %v642
      %vm649 = vcmask 1045508
      %v652 = vsel %vm649, %v643, %v644
      %v653 = vsel %vm504, %v648, %v652
      %655 = vst [vmem:[%s351] sm:$0xff] %v653
      %p656 = scmp.eq.s32.totalorder %s23, 0
      // Predicated region
      $region37: #{decoder_forward.2} parent=35 // pred_check
        %p657 = pneg %p656
      $region38: #{decoder_forward.2} parent=35 // pred_check_branch
        %659 = sbr.rel (%p657) target = $region40
      $region39: #{decoder_forward.2} parent=35 // pred_region
        %vm660 = vcmask 3072
        %661 = vst.msk [vmem:[%s357] sm:$0xf] %vm660, 0.0
        %662 = vst.msk [vmem:[%s361] sm:$0xf] %vm660, 0.0
      $region40: #{decoder_forward.2} parent=35 // pred_fallthru
        _
      %v663 = vld [vmem:[%s343] sm:$0xf]
      %v665 = vperm.slane %v663, 0
      %v666 = vperm.slane %v663, 1
      %v667 = vperm.slane %v663, 2
      %v668 = vperm.slane %v663, 3
      %v673 = vmul.f32 %v596, %v665
      %v674 = vmul.f32 %v609, %v666
      %v675 = vmul.f32 %v622, %v667
      %v676 = vmul.f32 %v635, %v668
      %v677 = vld [vmem:[%s357] sm:$0xf]
      %v678 = vsel %vm504, %v673, 0.0
      %v679 = vsel %vm504, %v674, 0.0
      %v680 = vadd.f32 %v678, %v679
      %v681 = vsel %vm504, %v675, 0.0
      %v682 = vadd.f32 %v680, %v681
      %v683 = vsel %vm504, %v676, 0.0
      %v684 = vadd.f32 %v682, %v683
      %685 = vadd.xlane.f32.xlu0 %v684
      %v686 = vpop.xlane.xlu0 %685
      %v687 = vadd.f32 %v677, %v686
      %vm688 = vcmask 3072
      %689 = vst.msk [vmem:[%s357] sm:$0xf] %vm688, %v687
      %v690 = vld [vmem:[%s361] sm:$0xf]
      %v691 = vmul.f32 %v673, %v673
      %v692 = vmul.f32 %v674, %v674
      %v693 = vmul.f32 %v675, %v675
      %v694 = vmul.f32 %v676, %v676
      %v695 = vsel %vm504, %v691, 0.0
      %v696 = vsel %vm504, %v692, 0.0
      %v697 = vadd.f32 %v695, %v696
      %v698 = vsel %vm504, %v693, 0.0
      %v699 = vadd.f32 %v697, %v698
      %v700 = vsel %vm504, %v694, 0.0
      %v701 = vadd.f32 %v699, %v700
      %702 = vadd.xlane.f32.xlu0 %v701
      %v703 = vpop.xlane.xlu0 %702
      %v704 = vadd.f32 %v690, %v703
      %705 = vst.msk [vmem:[%s361] sm:$0xf] %vm688, %v704
      %s706 = sadd.s32 %s22, %s23
      %s707 = smul.u32 4, %s706
      %p708 = scmp.lt.s32.totalorder %s707, 7
      %s709 = scalar_select %p708, %s707, 7
      %s710 = smul.addr %s709, 2
      %s711 = scalar_lea.vmem %s4, %s710
      %p712 = scmp.lt.s32.totalorder %s22, 1
      %s713 = scalar_select %p712, %s22, 1
      %s714 = smul.addr %s713, 4
      %s715 = scalar_lea.vmem %s5, %s714
      %p716 = scmp.lt.s32.totalorder %s22, 1
      %s717 = scalar_select %p716, %s22, 1
      %s718 = smul.addr %s717, 4
      %s719 = scalar_lea.vmem %s6, %s718
      // Predicated region
      $region41: #{decoder_forward.2} parent=35 // pred_check
        %p720 = pneg %p157
      $region42: #{decoder_forward.2} parent=35 // pred_check_branch
        %722 = sbr.rel (%p720) target = $region44
      $region43: #{decoder_forward.2} parent=35 // pred_region
        %s723 = sadd.s32 %s22, %s23
        %s724 = smul.u32 4, %s723
      $region44: #{decoder_forward.2} parent=35 // pred_fallthru
        _
      // Predicated region
      $region45: #{decoder_forward.2} parent=35 // pred_check
        %p725 = pneg %p183
      $region46: #{decoder_forward.2} parent=35 // pred_check_branch
        %727 = sbr.rel (%p725) target = $region48
      $region47: #{decoder_forward.2} parent=35 // pred_region
        _
      $region48: #{decoder_forward.2} parent=35 // pred_fallthru
        _
      // Predicated region
      $region49: #{decoder_forward.2} parent=35 // pred_check
        %p728 = pneg %p209
      $region50: #{decoder_forward.2} parent=35 // pred_check_branch
        %730 = sbr.rel (%p728) target = $region52
      $region51: #{decoder_forward.2} parent=35 // pred_region
        _
      $region52: #{decoder_forward.2} parent=35 // pred_fallthru
        _
    $region36: #{decoder_forward.2} parent=5 // pred_fallthru
      _
    %p731 = scmp.le.s32.totalorder 2, %s13
    // Predicated region
    $region53: #{decoder_forward.2} parent=5 // pred_check
      %p732 = pneg %p731
    $region54: #{decoder_forward.2} parent=5 // pred_check_branch
      %734 = sbr.rel (%p732) target = $region56
    $region55: #{decoder_forward.2} parent=5 // pred_region
      %s735 = ssub.s32 %s13, 2
      // Predicated region
      $region57: #{decoder_forward.2} parent=55 // pred_check
        %p736 = pneg %p163
      $region58: #{decoder_forward.2} parent=55 // pred_check_branch
        %738 = sbr.rel (%p736) target = $region60
      $region59: #{decoder_forward.2} parent=55 // pred_region
        %s739 = sadd.s32 %s24, %s25
        %s740 = smul.u32 4, %s739
        %p741 = scmp.lt.s32.totalorder %s740, 7
        %s742 = scalar_select %p741, %s740, 7
        %s743 = smul.addr %s742, 2
        %s744 = scalar_lea.vmem %s4, %s743
      $region60: #{decoder_forward.2} parent=55 // pred_fallthru
        _
      // Predicated region
      $region61: #{decoder_forward.2} parent=55 // pred_check
        %p745 = pneg %p189
      $region62: #{decoder_forward.2} parent=55 // pred_check_branch
        %747 = sbr.rel (%p745) target = $region64
      $region63: #{decoder_forward.2} parent=55 // pred_region
        %p748 = scmp.lt.s32.totalorder %s24, 1
        %s749 = scalar_select %p748, %s24, 1
        %s750 = smul.addr %s749, 4
        %s751 = scalar_lea.vmem %s5, %s750
      $region64: #{decoder_forward.2} parent=55 // pred_fallthru
        _
      // Predicated region
      $region65: #{decoder_forward.2} parent=55 // pred_check
        %p752 = pneg %p215
      $region66: #{decoder_forward.2} parent=55 // pred_check_branch
        %754 = sbr.rel (%p752) target = $region68
      $region67: #{decoder_forward.2} parent=55 // pred_region
        %p755 = scmp.lt.s32.totalorder %s24, 1
        %s756 = scalar_select %p755, %s24, 1
        %s757 = smul.addr %s756, 4
        %s758 = scalar_lea.vmem %s6, %s757
      $region68: #{decoder_forward.2} parent=55 // pred_fallthru
        _
    $region56: #{decoder_forward.2} parent=5 // pred_fallthru
      _
  $region6: #{decoder_forward.2} parent=0 // loop_footer
    %s17 = sadd.s32 1, %s13
  $region7: #{decoder_forward.2} parent=0 // loop_footer_branch
    %12 = sbr.rel target = $region3
  $region8: #{decoder_forward.2} parent=0 // loop_exit
    _

</llo_original>
